<compile_context>
chip_gen: v7x
topology: tpu7x:2x2x1
jax: 0.10.0
libtpu: 0.0.40
codegen_flags: <defaults>
</compile_context>

<pallas_src>
import functools

import jax
import jax.numpy as jnp
from jax.experimental import pallas as pl
from jax.experimental.pallas import tpu as pltpu


_MAX_LANES = 1024
_TARGET_TILE_ELEMS = 1 << 20          # ~4 MiB per f32 block, ~2 MiB bf16
_VMEM_LIMIT_BYTES = 32 * 1024 * 1024  # covers 2in+2out double-buffered blocks on all gens


def _round_up(a, b):
    return ((a + b - 1) // b) * b


def _actquant_kernel(scale_ref, x_ref, o_ref, *, minval, maxval):
    # scale_ref: (1,) f32 in SMEM; x_ref / o_ref: (tile_rows, lanes) VMEM tiles.
    s = scale_ref[0]
    x = x_ref[...].astype(jnp.float32)
    q = jnp.clip(jnp.round(x / s), minval, maxval)      # true divide: faithful to torch
    o_ref[...] = (q * s).astype(o_ref.dtype)


def _quant_jnp(x, scale, minval, maxval):
    """Plain-jnp fallback for tiny tensors / sub-128-element tails."""
    xf = x.astype(jnp.float32)
    q = jnp.clip(jnp.round(xf / scale), minval, maxval)
    return (q * scale).astype(x.dtype)


def act_quant_layer(x, output_scale, num_bits=8):
    """Pallas implementation of ActQuantLayer.forward (calib=False path)."""
    minval = float(-(1 << (num_bits - 1)))
    maxval = float((1 << (num_bits - 1)) - 1)

    scale = jnp.asarray(output_scale, jnp.float32).reshape(1)

    orig_shape = x.shape
    total = x.size
    flat = x.reshape(-1)                       # contiguous flatten: free

    bulk_len = (total // 128) * 128
    if bulk_len == 0:
        # Tiny tensor: a kernel launch is not worth it.
        return _quant_jnp(flat, scale[0], minval, maxval).reshape(orig_shape)

    # Largest lane-dense width (multiple of 128) dividing the bulk.
    lanes = 128
    for cand in (_MAX_LANES, 512, 256):
        if bulk_len % cand == 0:
            lanes = cand
            break
    rows = bulk_len // lanes

    itemsize = jnp.dtype(x.dtype).itemsize
    sub = {4: 8, 2: 16, 1: 32}.get(itemsize, 8)          # sublane granularity per dtype

    max_rows = max(sub, (_TARGET_TILE_ELEMS // lanes) // sub * sub)
    if rows > max_rows:
        tile_rows = max_rows
    elif rows >= 2 * sub:
        # Medium input: make >= 2 blocks so a "parallel" grid can use both
        # v7x TensorCores and overlap DMA with compute.
        tile_rows = min(rows, _round_up(pl.cdiv(rows, 2), sub))
    else:
        tile_rows = rows                                  # single full-extent block
    n_blocks = pl.cdiv(rows, tile_rows)

    bulk = flat if bulk_len == total else flat[:bulk_len]
    x2d = bulk.reshape(rows, lanes)

    kernel = functools.partial(_actquant_kernel, minval=minval, maxval=maxval)

    out2d = pl.pallas_call(
        kernel,
        out_shape=jax.ShapeDtypeStruct((rows, lanes), x.dtype),
        grid_spec=pltpu.PrefetchScalarGridSpec(
            num_scalar_prefetch=0,
            grid=(n_blocks,),
            in_specs=[
                pl.BlockSpec(memory_space=pltpu.MemorySpace.SMEM),       # output_scale (1,)
                pl.BlockSpec((tile_rows, lanes), lambda i: (i, 0)),      # x tile
            ],
            out_specs=pl.BlockSpec((tile_rows, lanes), lambda i: (i, 0)),
        ),
        compiler_params=pltpu.CompilerParams(
            dimension_semantics=("parallel",),            # independent row tiles -> v7x megacore
            vmem_limit_bytes=_VMEM_LIMIT_BYTES,
        ),
        cost_estimate=pl.CostEstimate(
            flops=5 * bulk_len,
            transcendentals=0,
            bytes_accessed=2 * bulk_len * itemsize + 4,
        ),
    )(scale, x2d)

    out_bulk = out2d.reshape(-1)
    if bulk_len == total:
        return out_bulk.reshape(orig_shape)

    # Sub-128-element tail handled with plain jnp, then stitched back.
    tail_out = _quant_jnp(flat[bulk_len:], scale[0], minval, maxval)
    return jnp.concatenate([out_bulk, tail_out]).reshape(orig_shape)


def _reference(x, scale, num_bits):
    minval = -(1 << (num_bits - 1))
    maxval = (1 << (num_bits - 1)) - 1
    xf = x.astype(jnp.float32)
    q = jnp.clip(jnp.round(xf / scale), minval, maxval)
    return (q * scale).astype(x.dtype)


def _check(out, ref, scale, name):
    out_f = jnp.asarray(out, jnp.float32)
    ref_f = jnp.asarray(ref, jnp.float32)
    diff = jnp.abs(out_f - ref_f)
    # Bulk must match to float precision; tolerate a vanishing fraction of
    # one-quant-level tie flips from non-identical f32 division lowerings.
    frac_close = float(jnp.mean((diff <= 1e-3).astype(jnp.float32)))
    max_diff = float(jnp.max(diff))
    assert frac_close >= 0.995, f"{name}: mismatch fraction too high ({frac_close})"
    assert max_diff <= scale + 1e-3, f"{name}: max diff {max_diff} exceeds one quant level"


if __name__ == "__main__":
    key = jax.random.PRNGKey(0)
    kx, ko, kb = jax.random.split(key, 3)

    num_bits = 8
    # Deterministic init of the `output_scale` Parameter (shape (1,), positive).
    output_scale = jnp.array([0.0625], dtype=jnp.float32)
    s = float(output_scale[0])

    # NCHW activation: batch=2, channels=4, spatial=16x16 (f32 path).
    x = jax.random.normal(kx, (2, 4, 16, 16), dtype=jnp.float32)
    out = jax.block_until_ready(act_quant_layer(x, output_scale, num_bits))
    assert out.shape == x.shape and out.dtype == x.dtype
    _check(out, _reference(x, s, num_bits), s, "f32")

    # Narrow-dtype I/O path (bf16 storage, f32 compute in-kernel).
    xb = jax.random.normal(kb, (2, 4, 16, 16), dtype=jnp.bfloat16)
    out_b = jax.block_until_ready(act_quant_layer(xb, output_scale, num_bits))
    assert out_b.shape == xb.shape and out_b.dtype == xb.dtype
    _check(out_b, _reference(xb, s, num_bits), s, "bf16")

    # Element count not a multiple of 128: 128-aligned bulk via kernel + jnp tail.
    x_odd = jax.random.normal(ko, (2, 3, 7, 5), dtype=jnp.float32)   # 210 elems
    out_odd = jax.block_until_ready(act_quant_layer(x_odd, output_scale, num_bits))
    assert out_odd.shape == x_odd.shape and out_odd.dtype == x_odd.dtype
    _check(out_odd, _reference(x_odd, s, num_bits), s, "f32-odd")

    print("KERNEL_OK")
</pallas_src>

<mosaic_0001>
module attributes {stable_mosaic.version = 11 : i64} {
  func.func @_actquant_kernel(%arg0: i32, %arg1: memref<1xf32, #tpu.memory_space<smem>>, %arg2: memref<2x1024xf32, #tpu.memory_space<vmem>>, %arg3: memref<2x1024xf32, #tpu.memory_space<vmem>>) attributes {dimension_semantics = [#tpu.dimension_semantics<parallel>], iteration_bounds = array<i64: 1>, scalar_prefetch = 0 : i64, scratch_operands = 0 : i64, tpu.core_type = #tpu.core_type<tc>, window_params = [{transform_indices = @transform_0, window_bounds = array<i64: 1>}, {transform_indices = @transform_1, window_bounds = array<i64: 2, 1024>}, {transform_indices = @transform_2, window_bounds = array<i64: 2, 1024>}]} {
    %c0 = arith.constant 0 : index
    %0 = memref.load %arg1[%c0] : memref<1xf32, #tpu.memory_space<smem>>
    %c0_0 = arith.constant 0 : index
    %c0_1 = arith.constant 0 : index
    %1 = vector.load %arg2[%c0_0, %c0_1] : memref<2x1024xf32, #tpu.memory_space<vmem>>, vector<2x1024xf32>
    %2 = vector.broadcast %0 : f32 to vector<2x1024xf32>
    %3 = arith.divf %1, %2 : vector<2x1024xf32>
    %4 = math.roundeven %3 : vector<2x1024xf32>
    %cst = arith.constant -1.280000e+02 : f32
    %cst_2 = arith.constant 1.270000e+02 : f32
    %5 = vector.broadcast %cst : f32 to vector<2x1024xf32>
    %6 = arith.maximumf %5, %4 : vector<2x1024xf32>
    %7 = vector.broadcast %cst_2 : f32 to vector<2x1024xf32>
    %8 = arith.minimumf %7, %6 : vector<2x1024xf32>
    %9 = vector.broadcast %0 : f32 to vector<2x1024xf32>
    %10 = arith.mulf %8, %9 : vector<2x1024xf32>
    %c0_3 = arith.constant 0 : index
    %c0_4 = arith.constant 0 : index
    %11 = vector.load %arg3[%c0_3, %c0_4] : memref<2x1024xf32, #tpu.memory_space<vmem>>, vector<2x1024xf32>
    tpu.vector_store %arg3[%c0_3, %c0_4], %10 {strides = array<i32>} : memref<2x1024xf32, #tpu.memory_space<vmem>>, vector<2x1024xf32>,
    return
  }
  func.func @transform_0(%arg0: i32) -> i32 {
    %c0_i32 = arith.constant 0 : i32
    %c0_i32_0 = arith.constant 0 : i32
    return %c0_i32 : i32
  }
  func.func @transform_1(%arg0: i32) -> (i32, i32) {
    %c0_i32 = arith.constant 0 : i32
    %c0_i32_0 = arith.constant 0 : i32
    return %arg0, %c0_i32 : i32, i32
  }
  func.func @transform_2(%arg0: i32) -> (i32, i32) {
    %c0_i32 = arith.constant 0 : i32
    %c0_i32_0 = arith.constant 0 : i32
    return %arg0, %c0_i32 : i32, i32
  }
}

</mosaic_0001>

<llo_original>
// kernel: tpu_custom_call.1
$region0: #{tpu_custom_call.1}
  #allocation0 [shape = 'u32[]', space=smem, size = 0x4, offset = 0x4, fixed_abs, tag = 'smem constant byte address 0x4 - core index']
  #allocation1 [shape = 'u32[144,128]{1,0:T(1,128)}', space=vmem, size = 0x12000, scoped, tag = 'internal scratch']
  #allocation2 [shape = 'f32[1]{0:T(128)S(6)}', space=smem, size = 0x200, scoped, tag = 'scoped memory for tpu_custom_call.1']
  %s0 = inlined_call_operand.<no memory space> [shape: f32[1], index: 0, kind: input, shape index: {}]
  %s1 = inlined_call_operand.hbm [shape: f32[2,1024], index: 1, kind: input, shape index: {}]
  %s2 = inlined_call_operand.hbm [shape: f32[2,1024], index: 2, kind: output, shape index: {}]
  %s3 = sld [smem:[#allocation0]]
  $region22: #{tpu_custom_call.1} parent=0
    _
  %s5 = ssub.s32 1, %s3
  %s6 = scalar_select 0, %s5, %s3
  %7 = sst [smem:[#allocation2]] %s0
  $region1: #{tpu_custom_call.1} parent=0
    #allocation3 [shape = 'u8[8192]{0}', space=vmem, size = 0x2000, scoped, tag = 'input window, operand 1, single buffered']
    #allocation4 [shape = 's32[1]{0}', space=sflag, size = 0x4, scoped, tag = 'scoped memory for tpu_custom_call.1']
    #allocation5 [shape = 's32[1]{0}', space=sflag, size = 0x4, scoped, tag = 'scoped memory for tpu_custom_call.1']
    #allocation6 [shape = 'u8[8192]{0}', space=vmem, size = 0x2000, scoped, tag = 'output window, operand 0, single buffered']
    %8 = vsyncpa [#allocation4], 0
    %9 = vsyncpa [#allocation5], 0
    // Predicated region
    $region2: #{tpu_custom_call.1} parent=1 // pred_check
      _
    $region3: #{tpu_custom_call.1} parent=1 // pred_check_branch
      %11 = sbr.rel (0) target = $region5
    $region4: #{tpu_custom_call.1} parent=1 // pred_region
      _
    $region5: #{tpu_custom_call.1} parent=1 // pred_fallthru
      _
    // Predicated region
    $region6: #{tpu_custom_call.1} parent=1 // pred_check
      _
    $region7: #{tpu_custom_call.1} parent=1 // pred_check_branch
      %13 = sbr.rel (0) target = $region9
    $region8: #{tpu_custom_call.1} parent=1 // pred_region
      %s15 = ssub.s32 256, 256
      %16 = vsyncadd [#allocation4], %s15
      %s18 = sshll.u32 [#allocation3], 4
      %s19 = int_to_ptr.vmem [resolvable:$true] %s18
      %21 = dma.hbm_to_vmem [thread:$0]  %s1, 256, %s19, [#allocation4]
    $region9: #{tpu_custom_call.1} parent=1 // pred_fallthru
      _
    // Predicated region
    $region10: #{tpu_custom_call.1} parent=1 // pred_check
      _
    $region11: #{tpu_custom_call.1} parent=1 // pred_check_branch
      %23 = sbr.rel (0) target = $region13
    $region12: #{tpu_custom_call.1} parent=1 // pred_region
      %24 = dma.done [#allocation4], 256
    $region13: #{tpu_custom_call.1} parent=1 // pred_fallthru
      _
    %s25 = sld [smem:[#allocation2]]
    %v26 = vld [vmem:[#allocation3] sm:$0xff]
    %v27 = vld [vmem:[#allocation3 + $0x8] sm:$0xff]
    %v28 = vstv %s25
    %v29 = vrcp.pop %v28
    %v30 = vmul.f32 %v26, %v29
    %v31 = vmul.f32 %v27, %v29
    %v32 = vround.ne.pseudo %v30
    %v33 = vround.ne.pseudo %v31
    %v34 = vmax.f32 %v32, -128.0
    %v35 = vmax.f32 %v33, -128.0
    %v36 = vmin.f32 %v34, 127.0
    %v37 = vmin.f32 %v35, 127.0
    %v38 = vmul.f32 %v36, %v28
    %v39 = vmul.f32 %v37, %v28
    %40 = vst [vmem:[#allocation6] sm:$0xff] %v38
    %41 = vst [vmem:[#allocation6 + $0x8] sm:$0xff] %v39
    // Predicated region
    $region14: #{tpu_custom_call.1} parent=1 // pred_check
      _
    $region15: #{tpu_custom_call.1} parent=1 // pred_check_branch
      %43 = sbr.rel (0) target = $region17
    $region16: #{tpu_custom_call.1} parent=1 // pred_region
      %s45 = ssub.s32 256, 256
      %46 = vsyncadd [#allocation5], %s45
      %s48 = sshll.u32 [#allocation6], 4
      %s49 = int_to_ptr.vmem [resolvable:$true] %s48
      %51 = dma.vmem_to_hbm [thread:$0]  %s49, 256, %s2, [#allocation5]
    $region17: #{tpu_custom_call.1} parent=1 // pred_fallthru
      _
    // Predicated region
    $region18: #{tpu_custom_call.1} parent=1 // pred_check
      _
    $region19: #{tpu_custom_call.1} parent=1 // pred_check_branch
      %53 = sbr.rel (0) target = $region21
    $region20: #{tpu_custom_call.1} parent=1 // pred_region
      %54 = dma.done [#allocation5], 256
    $region21: #{tpu_custom_call.1} parent=1 // pred_fallthru
      _
    %55 = vsyncpa [#allocation4], 1
    %56 = vsyncpa [#allocation5], 1

</llo_original>
